<compile_context>
chip_gen: v5e
topology: v5e:2x2
jax: 0.10.0
libtpu: 0.0.40
codegen_flags: <defaults>
</compile_context>

<pallas_src>
import jax
import jax.numpy as jnp
from jax.experimental import pallas as pl
from jax.experimental.pallas import tpu as pltpu


class Container0:
    def __init__(self, x, y):
        self.x = x
        self.y = y


class Container:
    def __init__(self, x, y):
        self.x = x
        self.y = y
        self.container0 = Container0(x, y)


def cm_kernel(x_ref, wt_ref, b_ref, o0_ref, o10_ref, o2x_ref, o2y_ref):
    # x_ref : (2, 4) input
    # wt_ref: (4, 4) W.T  (layout [in, out])
    # b_ref : (1, 4) bias row
    # outputs (all (2, 4)):
    #   o0  = linear1(linear1(x) + 3)
    #   o10 = linear1(x) + 1
    #   o2x = x - 2
    #   o2y = linear1(x) - 2
    x = x_ref[...]
    wt = wt_ref[...]
    b = b_ref[...]

    def linear1(a):
        # Rank-1 VPU accumulation: a @ wt + b, K = 4, all in-vreg (no MXU).
        acc = a[:, 0:1] * wt[0:1, :]
        for k in range(1, 4):
            acc = acc + a[:, k:k + 1] * wt[k:k + 1, :]
        return acc + b

    y = linear1(x)
    o0_ref[...] = linear1(y + 3.0)
    o10_ref[...] = y + 1.0
    o2x_ref[...] = x - 2.0
    o2y_ref[...] = y - 2.0


def _vmem_spec():
    return pl.BlockSpec(memory_space=pltpu.MemorySpace.VMEM)


@jax.jit
def _cm_compute(x, wt, b_row):
    """x: (2,4) f32; wt: (4,4) = W.T; b_row: (1,4). Returns 4 arrays."""
    out_shape = tuple(
        jax.ShapeDtypeStruct((2, 4), jnp.float32) for _ in range(4)
    )
    return pl.pallas_call(
        cm_kernel,
        out_shape=out_shape,
        in_specs=[_vmem_spec(), _vmem_spec(), _vmem_spec()],
        out_specs=tuple(_vmem_spec() for _ in range(4)),
        cost_estimate=pl.CostEstimate(
            flops=192, transcendentals=0, bytes_accessed=256
        ),
    )(x, wt, b_row)


def cm_forward(x, wt, b_row):
    o0, o10, o2x, o2y = _cm_compute(x, wt, b_row)
    return {
        0: o0,
        1: {0: o10},
        2: Container(o2x, o2y),
    }


if __name__ == "__main__":
    key = jax.random.PRNGKey(0)
    kx, kw, kb = jax.random.split(key, 3)

    # nn.Linear(4, 4)-style init: uniform(-1/sqrt(in), 1/sqrt(in)).
    bound = 1.0 / jnp.sqrt(4.0)
    w = jax.random.uniform(kw, (4, 4), jnp.float32, -bound, bound)  # [out, in]
    b = jax.random.uniform(kb, (4,), jnp.float32, -bound, bound)

    x = jax.random.normal(kx, (2, 4), jnp.float32)

    # Per-weight precompute, hoisted out of the per-call path (done once).
    wt = jnp.asarray(w.T)            # (in, out)
    b_row = jnp.reshape(b, (1, 4))   # bias as a row

    out = cm_forward(x, wt, b_row)

    jax.block_until_ready(out[0])
    jax.block_until_ready(out[1][0])
    jax.block_until_ready(out[2].x)
    jax.block_until_ready(out[2].y)
    jax.block_until_ready(out[2].container0.x)
    jax.block_until_ready(out[2].container0.y)

    # Pure-JAX reference at full f32 matmul precision.
    hi = jax.lax.Precision.HIGHEST
    y_ref = jnp.dot(x, w.T, precision=hi) + b
    o0_ref = jnp.dot(y_ref + 3.0, w.T, precision=hi) + b
    assert jnp.allclose(out[0], o0_ref, atol=1e-5)
    assert jnp.allclose(out[1][0], y_ref + 1.0, atol=1e-5)
    assert jnp.allclose(out[2].x, x - 2.0, atol=1e-5)
    assert jnp.allclose(out[2].y, y_ref - 2.0, atol=1e-5)
    assert jnp.allclose(out[2].container0.x, x - 2.0, atol=1e-5)
    assert jnp.allclose(out[2].container0.y, y_ref - 2.0, atol=1e-5)

    print("KERNEL_OK")
</pallas_src>

<mosaic_0001>
module attributes {stable_mosaic.version = 11 : i64} {
  func.func @cm_kernel(%arg0: memref<2x4xf32, #tpu.memory_space<vmem>>, %arg1: memref<4x4xf32, #tpu.memory_space<vmem>>, %arg2: memref<1x4xf32, #tpu.memory_space<vmem>>, %arg3: memref<2x4xf32, #tpu.memory_space<vmem>>, %arg4: memref<2x4xf32, #tpu.memory_space<vmem>>, %arg5: memref<2x4xf32, #tpu.memory_space<vmem>>, %arg6: memref<2x4xf32, #tpu.memory_space<vmem>>) attributes {dimension_semantics = [], scalar_prefetch = 0 : i64, scratch_operands = 0 : i64, tpu.core_type = #tpu.core_type<tc>} {
    %c0 = arith.constant 0 : index
    %c0_0 = arith.constant 0 : index
    %0 = vector.load %arg0[%c0, %c0_0] : memref<2x4xf32, #tpu.memory_space<vmem>>, vector<2x4xf32>
    %c0_1 = arith.constant 0 : index
    %c0_2 = arith.constant 0 : index
    %1 = vector.load %arg1[%c0_1, %c0_2] : memref<4x4xf32, #tpu.memory_space<vmem>>, vector<4x4xf32>
    %c0_3 = arith.constant 0 : index
    %c0_4 = arith.constant 0 : index
    %2 = vector.load %arg2[%c0_3, %c0_4] : memref<1x4xf32, #tpu.memory_space<vmem>>, vector<1x4xf32>
    %3 = vector.extract_strided_slice %0 {offsets = [0, 0], sizes = [2, 1], strides = [1, 1]} : vector<2x4xf32> to vector<2x1xf32>
    %4 = vector.extract_strided_slice %1 {offsets = [0, 0], sizes = [1, 4], strides = [1, 1]} : vector<4x4xf32> to vector<1x4xf32>
    %5 = vector.broadcast %3 : vector<2x1xf32> to vector<2x4xf32>
    %6 = vector.broadcast %4 : vector<1x4xf32> to vector<2x4xf32>
    %7 = arith.mulf %5, %6 : vector<2x4xf32>
    %8 = vector.extract_strided_slice %0 {offsets = [0, 1], sizes = [2, 1], strides = [1, 1]} : vector<2x4xf32> to vector<2x1xf32>
    %9 = vector.extract_strided_slice %1 {offsets = [1, 0], sizes = [1, 4], strides = [1, 1]} : vector<4x4xf32> to vector<1x4xf32>
    %10 = vector.broadcast %8 : vector<2x1xf32> to vector<2x4xf32>
    %11 = vector.broadcast %9 : vector<1x4xf32> to vector<2x4xf32>
    %12 = arith.mulf %10, %11 : vector<2x4xf32>
    %13 = arith.addf %7, %12 : vector<2x4xf32>
    %14 = vector.extract_strided_slice %0 {offsets = [0, 2], sizes = [2, 1], strides = [1, 1]} : vector<2x4xf32> to vector<2x1xf32>
    %15 = vector.extract_strided_slice %1 {offsets = [2, 0], sizes = [1, 4], strides = [1, 1]} : vector<4x4xf32> to vector<1x4xf32>
    %16 = vector.broadcast %14 : vector<2x1xf32> to vector<2x4xf32>
    %17 = vector.broadcast %15 : vector<1x4xf32> to vector<2x4xf32>
    %18 = arith.mulf %16, %17 : vector<2x4xf32>
    %19 = arith.addf %13, %18 : vector<2x4xf32>
    %20 = vector.extract_strided_slice %0 {offsets = [0, 3], sizes = [2, 1], strides = [1, 1]} : vector<2x4xf32> to vector<2x1xf32>
    %21 = vector.extract_strided_slice %1 {offsets = [3, 0], sizes = [1, 4], strides = [1, 1]} : vector<4x4xf32> to vector<1x4xf32>
    %22 = vector.broadcast %20 : vector<2x1xf32> to vector<2x4xf32>
    %23 = vector.broadcast %21 : vector<1x4xf32> to vector<2x4xf32>
    %24 = arith.mulf %22, %23 : vector<2x4xf32>
    %25 = arith.addf %19, %24 : vector<2x4xf32>
    %26 = vector.broadcast %2 : vector<1x4xf32> to vector<2x4xf32>
    %27 = arith.addf %25, %26 : vector<2x4xf32>
    %cst = arith.constant 3.000000e+00 : f32
    %28 = vector.broadcast %cst : f32 to vector<2x4xf32>
    %29 = arith.addf %27, %28 : vector<2x4xf32>
    %30 = vector.extract_strided_slice %29 {offsets = [0, 0], sizes = [2, 1], strides = [1, 1]} : vector<2x4xf32> to vector<2x1xf32>
    %31 = vector.extract_strided_slice %1 {offsets = [0, 0], sizes = [1, 4], strides = [1, 1]} : vector<4x4xf32> to vector<1x4xf32>
    %32 = vector.broadcast %30 : vector<2x1xf32> to vector<2x4xf32>
    %33 = vector.broadcast %31 : vector<1x4xf32> to vector<2x4xf32>
    %34 = arith.mulf %32, %33 : vector<2x4xf32>
    %35 = vector.extract_strided_slice %29 {offsets = [0, 1], sizes = [2, 1], strides = [1, 1]} : vector<2x4xf32> to vector<2x1xf32>
    %36 = vector.extract_strided_slice %1 {offsets = [1, 0], sizes = [1, 4], strides = [1, 1]} : vector<4x4xf32> to vector<1x4xf32>
    %37 = vector.broadcast %35 : vector<2x1xf32> to vector<2x4xf32>
    %38 = vector.broadcast %36 : vector<1x4xf32> to vector<2x4xf32>
    %39 = arith.mulf %37, %38 : vector<2x4xf32>
    %40 = arith.addf %34, %39 : vector<2x4xf32>
    %41 = vector.extract_strided_slice %29 {offsets = [0, 2], sizes = [2, 1], strides = [1, 1]} : vector<2x4xf32> to vector<2x1xf32>
    %42 = vector.extract_strided_slice %1 {offsets = [2, 0], sizes = [1, 4], strides = [1, 1]} : vector<4x4xf32> to vector<1x4xf32>
    %43 = vector.broadcast %41 : vector<2x1xf32> to vector<2x4xf32>
    %44 = vector.broadcast %42 : vector<1x4xf32> to vector<2x4xf32>
    %45 = arith.mulf %43, %44 : vector<2x4xf32>
    %46 = arith.addf %40, %45 : vector<2x4xf32>
    %47 = vector.extract_strided_slice %29 {offsets = [0, 3], sizes = [2, 1], strides = [1, 1]} : vector<2x4xf32> to vector<2x1xf32>
    %48 = vector.extract_strided_slice %1 {offsets = [3, 0], sizes = [1, 4], strides = [1, 1]} : vector<4x4xf32> to vector<1x4xf32>
    %49 = vector.broadcast %47 : vector<2x1xf32> to vector<2x4xf32>
    %50 = vector.broadcast %48 : vector<1x4xf32> to vector<2x4xf32>
    %51 = arith.mulf %49, %50 : vector<2x4xf32>
    %52 = arith.addf %46, %51 : vector<2x4xf32>
    %53 = vector.broadcast %2 : vector<1x4xf32> to vector<2x4xf32>
    %54 = arith.addf %52, %53 : vector<2x4xf32>
    %c0_5 = arith.constant 0 : index
    %c0_6 = arith.constant 0 : index
    %55 = vector.load %arg3[%c0_5, %c0_6] : memref<2x4xf32, #tpu.memory_space<vmem>>, vector<2x4xf32>
    tpu.vector_store %arg3[%c0_5, %c0_6], %54 {strides = array<i32>} : memref<2x4xf32, #tpu.memory_space<vmem>>, vector<2x4xf32>,
    %cst_7 = arith.constant 1.000000e+00 : f32
    %56 = vector.broadcast %cst_7 : f32 to vector<2x4xf32>
    %57 = arith.addf %27, %56 : vector<2x4xf32>
    %c0_8 = arith.constant 0 : index
    %c0_9 = arith.constant 0 : index
    %58 = vector.load %arg4[%c0_8, %c0_9] : memref<2x4xf32, #tpu.memory_space<vmem>>, vector<2x4xf32>
    tpu.vector_store %arg4[%c0_8, %c0_9], %57 {strides = array<i32>} : memref<2x4xf32, #tpu.memory_space<vmem>>, vector<2x4xf32>,
    %cst_10 = arith.constant 2.000000e+00 : f32
    %59 = vector.broadcast %cst_10 : f32 to vector<2x4xf32>
    %60 = arith.subf %0, %59 : vector<2x4xf32>
    %c0_11 = arith.constant 0 : index
    %c0_12 = arith.constant 0 : index
    %61 = vector.load %arg5[%c0_11, %c0_12] : memref<2x4xf32, #tpu.memory_space<vmem>>, vector<2x4xf32>
    tpu.vector_store %arg5[%c0_11, %c0_12], %60 {strides = array<i32>} : memref<2x4xf32, #tpu.memory_space<vmem>>, vector<2x4xf32>,
    %cst_13 = arith.constant 2.000000e+00 : f32
    %62 = vector.broadcast %cst_13 : f32 to vector<2x4xf32>
    %63 = arith.subf %27, %62 : vector<2x4xf32>
    %c0_14 = arith.constant 0 : index
    %c0_15 = arith.constant 0 : index
    %64 = vector.load %arg6[%c0_14, %c0_15] : memref<2x4xf32, #tpu.memory_space<vmem>>, vector<2x4xf32>
    tpu.vector_store %arg6[%c0_14, %c0_15], %63 {strides = array<i32>} : memref<2x4xf32, #tpu.memory_space<vmem>>, vector<2x4xf32>,
    return
  }
}

</mosaic_0001>

<llo_original>
// kernel: _cm_compute.1
$region0: #{_cm_compute.1}
  #allocation0 [shape = 'u32[]', space=smem, size = 0x4, offset = 0x4, fixed_abs, tag = 'smem constant byte address 0x4 - core index']
  #allocation1 [shape = 'u32[72,128]{1,0:T(1,128)}', space=vmem, size = 0x9000, scoped, tag = 'internal scratch']
  %s0 = inlined_call_operand.hbm [shape: f32[2,4], index: 0, kind: input, shape index: {}]
  %s1 = inlined_call_operand.hbm [shape: f32[4,4], index: 1, kind: input, shape index: {}]
  %s2 = inlined_call_operand.vmem [shape: f32[1,4], index: 2, kind: input, shape index: {}]
  %s3 = inlined_call_operand.hbm [shape: f32[2,4], index: 3, kind: output, shape index: {0}]
  %s4 = inlined_call_operand.hbm [shape: f32[2,4], index: 4, kind: output, shape index: {1}]
  %s5 = inlined_call_operand.hbm [shape: f32[2,4], index: 5, kind: output, shape index: {2}]
  %s6 = inlined_call_operand.hbm [shape: f32[2,4], index: 6, kind: output, shape index: {3}]
  %7 = xla_tuple %s3, %s4, %s5, %s6
  %s8 = sld [smem:[#allocation0]]
  $region54: #{_cm_compute.1} parent=0
    _
  %s10 = ssub.s32 1, %s8
  %s11 = scalar_select 0, %s10, %s8
  $region1: #{_cm_compute.1} parent=0
    #allocation2 [shape = 'u8[1024]{0}', space=vmem, size = 0x400, scoped, tag = 'input window, operand 0, single buffered']
    #allocation3 [shape = 's32[1]{0}', space=sflag, size = 0x4, scoped, tag = 'scoped memory for _cm_compute.1']
    #allocation4 [shape = 's32[1]{0}', space=sflag, size = 0x4, scoped, tag = 'scoped memory for _cm_compute.1']
    #allocation5 [shape = 'u8[2048]{0}', space=vmem, size = 0x800, scoped, tag = 'input window, operand 1, single buffered']
    #allocation6 [shape = 's32[1]{0}', space=sflag, size = 0x4, scoped, tag = 'scoped memory for _cm_compute.1']
    #allocation7 [shape = 'u8[1024]{0}', space=vmem, size = 0x400, scoped, tag = 'output window, operand 0, single buffered']
    #allocation8 [shape = 'u8[1024]{0}', space=vmem, size = 0x400, scoped, tag = 'output window, operand 1, single buffered']
    #allocation9 [shape = 's32[1]{0}', space=sflag, size = 0x4, scoped, tag = 'scoped memory for _cm_compute.1']
    #allocation10 [shape = 'u8[1024]{0}', space=vmem, size = 0x400, scoped, tag = 'output window, operand 2, single buffered']
    #allocation11 [shape = 'u8[1024]{0}', space=vmem, size = 0x400, scoped, tag = 'output window, operand 3, single buffered']
    #allocation12 [shape = 's32[1]{0}', space=sflag, size = 0x4, scoped, tag = 'scoped memory for _cm_compute.1']
    %12 = vsyncpa [#allocation3], 0
    %13 = vsyncpa [#allocation6], 0
    %14 = vsyncpa [#allocation4], 0
    %15 = vsyncpa [#allocation9], 0
    %16 = vsyncpa [#allocation12], 0
    // Predicated region
    $region2: #{_cm_compute.1} parent=1 // pred_check
      _
    $region3: #{_cm_compute.1} parent=1 // pred_check_branch
      %18 = sbr.rel (0) target = $region5
    $region4: #{_cm_compute.1} parent=1 // pred_region
      %20 = vsyncadd [#allocation3], 0
      %s22 = sshll.u32 %s0, 4
      %s23 = int_to_ptr.hbm [resolvable:$true] %s22
      %s24 = sshll.u32 [#allocation2], 4
      %s25 = int_to_ptr.vmem [resolvable:$true] %s24
      %27 = dma.hbm_to_vmem [thread:$0]  %s23, 32, %s25, [#allocation3]
    $region5: #{_cm_compute.1} parent=1 // pred_fallthru
      _
    // Predicated region
    $region6: #{_cm_compute.1} parent=1 // pred_check
      _
    $region7: #{_cm_compute.1} parent=1 // pred_check_branch
      %29 = sbr.rel (0) target = $region9
    $region8: #{_cm_compute.1} parent=1 // pred_region
      %31 = vsyncadd [#allocation6], 0
      %s33 = sshll.u32 %s1, 4
      %s34 = int_to_ptr.hbm [resolvable:$true] %s33
      %s35 = sshll.u32 [#allocation5], 4
      %s36 = int_to_ptr.vmem [resolvable:$true] %s35
      %38 = dma.hbm_to_vmem [thread:$0]  %s34, 64, %s36, [#allocation6]
    $region9: #{_cm_compute.1} parent=1 // pred_fallthru
      _
    // Predicated region
    $region10: #{_cm_compute.1} parent=1 // pred_check
      _
    $region11: #{_cm_compute.1} parent=1 // pred_check_branch
      %40 = sbr.rel (0) target = $region13
    $region12: #{_cm_compute.1} parent=1 // pred_region
      _
    $region13: #{_cm_compute.1} parent=1 // pred_fallthru
      _
    // Predicated region
    $region14: #{_cm_compute.1} parent=1 // pred_check
      _
    $region15: #{_cm_compute.1} parent=1 // pred_check_branch
      %42 = sbr.rel (0) target = $region17
    $region16: #{_cm_compute.1} parent=1 // pred_region
      %44 = dma.done [#allocation3], 32
    $region17: #{_cm_compute.1} parent=1 // pred_fallthru
      _
    // Predicated region
    $region18: #{_cm_compute.1} parent=1 // pred_check
      _
    $region19: #{_cm_compute.1} parent=1 // pred_check_branch
      %46 = sbr.rel (0) target = $region21
    $region20: #{_cm_compute.1} parent=1 // pred_region
      %48 = dma.done [#allocation6], 64
    $region21: #{_cm_compute.1} parent=1 // pred_fallthru
      _
    %v49 = vld [vmem:[#allocation2] sm:$0x3]
    %v50 = vld [vmem:[#allocation5] sm:$0xf]
    %v51 = vld [vmem:[%s2] sm:$0x1]
    %53 = vset.pattern.permute.xlu0 0
    %54 = vperm.xlu0 %53, %v49
    %v55 = vpop.permute.xlu0 %54
    %v57 = vperm.slane %v50, 0
    %v58 = vmul.f32 %v55, %v57
    %59 = vset.pattern.permute.xlu0 1
    %60 = vperm.xlu0 %59, %v49
    %v61 = vpop.permute.xlu0 %60
    %v63 = vperm.slane %v50, 1
    %v64 = vmul.f32 %v61, %v63
    %v65 = vadd.f32 %v58, %v64
    %66 = vset.pattern.permute.xlu0 2
    %67 = vperm.xlu0 %66, %v49
    %v68 = vpop.permute.xlu0 %67
    %v70 = vperm.slane %v50, 2
    %v71 = vmul.f32 %v68, %v70
    %v72 = vadd.f32 %v65, %v71
    %73 = vset.pattern.permute.xlu0 3
    %74 = vperm.xlu0 %73, %v49
    %v75 = vpop.permute.xlu0 %74
    %v77 = vperm.slane %v50, 3
    %v78 = vmul.f32 %v75, %v77
    %v79 = vadd.f32 %v72, %v78
    %v81 = vperm.slane %v51, 0
    %v83 = vadd.f32 %v79, %v81
    %v84 = vadd.f32 %v83, 3.0
    %86 = vset.pattern.permute.xlu0 0
    %87 = vperm.xlu0 %86, %v84
    %v88 = vpop.permute.xlu0 %87
    %v90 = vmul.f32 %v88, %v57
    %91 = vset.pattern.permute.xlu0 1
    %92 = vperm.xlu0 %91, %v84
    %v93 = vpop.permute.xlu0 %92
    %v95 = vmul.f32 %v93, %v63
    %v96 = vadd.f32 %v90, %v95
    %97 = vset.pattern.permute.xlu0 2
    %98 = vperm.xlu0 %97, %v84
    %v99 = vpop.permute.xlu0 %98
    %v101 = vmul.f32 %v99, %v70
    %v102 = vadd.f32 %v96, %v101
    %103 = vset.pattern.permute.xlu0 3
    %104 = vperm.xlu0 %103, %v84
    %v105 = vpop.permute.xlu0 %104
    %v107 = vmul.f32 %v105, %v77
    %v108 = vadd.f32 %v102, %v107
    %v109 = vadd.f32 %v108, %v81
    %vm110 = vcmask 25600
    %111 = vst.msk [vmem:[#allocation7] sm:$0x3] %vm110, %v109
    %v112 = vadd.f32 %v83, 1.0
    %113 = vst.msk [vmem:[#allocation8] sm:$0x3] %vm110, %v112
    %v114 = vsub.f32 %v49, 2.0
    %115 = vst.msk [vmem:[#allocation10] sm:$0x3] %vm110, %v114
    %v116 = vsub.f32 %v83, 2.0
    %117 = vst.msk [vmem:[#allocation11] sm:$0x3] %vm110, %v116
    // Predicated region
    $region22: #{_cm_compute.1} parent=1 // pred_check
      _
    $region23: #{_cm_compute.1} parent=1 // pred_check_branch
      %119 = sbr.rel (0) target = $region25
    $region24: #{_cm_compute.1} parent=1 // pred_region
      %121 = vsyncadd [#allocation4], 0
      %s123 = sshll.u32 [#allocation7], 4
      %s124 = int_to_ptr.vmem [resolvable:$true] %s123
      %s125 = sshll.u32 %s3, 4
      %s126 = int_to_ptr.hbm [resolvable:$true] %s125
      %128 = dma.vmem_to_hbm [thread:$0]  %s124, 32, %s126, [#allocation4]
    $region25: #{_cm_compute.1} parent=1 // pred_fallthru
      _
    // Predicated region
    $region26: #{_cm_compute.1} parent=1 // pred_check
      _
    $region27: #{_cm_compute.1} parent=1 // pred_check_branch
      %130 = sbr.rel (0) target = $region29
    $region28: #{_cm_compute.1} parent=1 // pred_region
      %132 = vsyncadd [#allocation9], 0
      %s134 = sshll.u32 [#allocation8], 4
      %s135 = int_to_ptr.vmem [resolvable:$true] %s134
      %s136 = sshll.u32 %s4, 4
      %s137 = int_to_ptr.hbm [resolvable:$true] %s136
      %139 = dma.vmem_to_hbm [thread:$0]  %s135, 32, %s137, [#allocation9]
    $region29: #{_cm_compute.1} parent=1 // pred_fallthru
      _
    // Predicated region
    $region30: #{_cm_compute.1} parent=1 // pred_check
      _
    $region31: #{_cm_compute.1} parent=1 // pred_check_branch
      %141 = sbr.rel (0) target = $region33
    $region32: #{_cm_compute.1} parent=1 // pred_region
      %143 = vsyncadd [#allocation9], 0
      %s145 = sshll.u32 [#allocation10], 4
      %s146 = int_to_ptr.vmem [resolvable:$true] %s145
      %s147 = sshll.u32 %s5, 4
      %s148 = int_to_ptr.hbm [resolvable:$true] %s147
      %150 = dma.vmem_to_hbm [thread:$0]  %s146, 32, %s148, [#allocation9]
    $region33: #{_cm_compute.1} parent=1 // pred_fallthru
      _
    // Predicated region
    $region34: #{_cm_compute.1} parent=1 // pred_check
      _
    $region35: #{_cm_compute.1} parent=1 // pred_check_branch
      %152 = sbr.rel (0) target = $region37
    $region36: #{_cm_compute.1} parent=1 // pred_region
      %154 = vsyncadd [#allocation12], 0
      %s156 = sshll.u32 [#allocation11], 4
      %s157 = int_to_ptr.vmem [resolvable:$true] %s156
      %s158 = sshll.u32 %s6, 4
      %s159 = int_to_ptr.hbm [resolvable:$true] %s158
      %161 = dma.vmem_to_hbm [thread:$0]  %s157, 32, %s159, [#allocation12]
    $region37: #{_cm_compute.1} parent=1 // pred_fallthru
      _
    // Predicated region
    $region38: #{_cm_compute.1} parent=1 // pred_check
      _
    $region39: #{_cm_compute.1} parent=1 // pred_check_branch
      %163 = sbr.rel (0) target = $region41
    $region40: #{_cm_compute.1} parent=1 // pred_region
      %165 = dma.done [#allocation4], 32
    $region41: #{_cm_compute.1} parent=1 // pred_fallthru
      _
    // Predicated region
    $region42: #{_cm_compute.1} parent=1 // pred_check
      _
    $region43: #{_cm_compute.1} parent=1 // pred_check_branch
      %167 = sbr.rel (0) target = $region45
    $region44: #{_cm_compute.1} parent=1 // pred_region
      %169 = dma.done [#allocation9], 32
    $region45: #{_cm_compute.1} parent=1 // pred_fallthru
      _
    // Predicated region
    $region46: #{_cm_compute.1} parent=1 // pred_check
      _
    $region47: #{_cm_compute.1} parent=1 // pred_check_branch
      %171 = sbr.rel (0) target = $region49
    $region48: #{_cm_compute.1} parent=1 // pred_region
      %173 = dma.done [#allocation9], 32
    $region49: #{_cm_compute.1} parent=1 // pred_fallthru
      _
    // Predicated region
    $region50: #{_cm_compute.1} parent=1 // pred_check
      _
    $region51: #{_cm_compute.1} parent=1 // pred_check_branch
      %175 = sbr.rel (0) target = $region53
    $region52: #{_cm_compute.1} parent=1 // pred_region
      %177 = dma.done [#allocation12], 32
    $region53: #{_cm_compute.1} parent=1 // pred_fallthru
      _
    %178 = vsyncpa [#allocation3], 1
    %179 = vsyncpa [#allocation6], 1
    %180 = vsyncpa [#allocation4], 1
    %181 = vsyncpa [#allocation9], 1
    %182 = vsyncpa [#allocation12], 1

</llo_original>
